<compile_context>
chip_gen: v5e
topology: v5e:2x2
jax: 0.10.0
libtpu: 0.0.40
codegen_flags: <defaults>
</compile_context>

<pallas_src>
import functools

import jax
import jax.numpy as jnp
from jax.experimental import pallas as pl
from jax.experimental.pallas import tpu as pltpu

LN_EPS = 1e-5


def _round_up(a, b):
    return ((a + b - 1) // b) * b


def _pick_lanes():
    """256 lanes on 256x256-MXU chips (v6e/v7x), 128 elsewhere (always safe)."""
    try:
        kind = jax.devices()[0].device_kind.lower()
    except Exception:
        return 128
    if "v6" in kind or "v7" in kind:
        return 256
    return 128


def resnet_block_kernel(x_ref, w_ref, b_ref, g_ref, beta_ref, avg_ref, o_ref,
                        *, mxu_dtype):
    # x_ref:    (tm, GH)      lane-packed input rows (G row-groups per row)
    # w_ref:    (L, GH, GH)   block-diag kron(I_G, W_l @ (I - J/H)), mxu_dtype
    # b_ref:    (L, 1, GH)    mean-centered bias, tiled across groups (f32)
    # g_ref:    (L, 1, GH)    layernorm gamma, tiled (f32)
    # beta_ref: (L, 1, GH)    layernorm beta, tiled (f32)
    # avg_ref:  (GH, GH)      block-diag averaging matrix kron(I_G, J/H), mxu_dtype
    # o_ref:    (tm, GH)      lane-packed output rows
    out = x_ref[...].astype(jnp.float32)
    avg = avg_ref[...]
    n_layers = w_ref.shape[0]
    for l in range(n_layers):  # small, static unrolled loop
        # Linear + LN mean-centering fused into one MXU matmul (f32 accumulate).
        hc = jnp.dot(out.astype(mxu_dtype), w_ref[l],
                     preferred_element_type=jnp.float32) + b_ref[l]
        # Segmented variance over each H-lane group via the block-diag
        # averaging matrix (MXU, mxu_dtype operands, f32 accumulation).
        var = jnp.dot((hc * hc).astype(mxu_dtype), avg,
                      preferred_element_type=jnp.float32)
        hn = hc * jax.lax.rsqrt(var + LN_EPS)
        hn = hn * g_ref[l] + beta_ref[l]
        # ReLU; Dropout is identity (eval mode).
        out = jnp.maximum(hn, 0.0)
    # Residual re-read at the end to keep live-vreg pressure low.
    o_ref[...] = (x_ref[...].astype(jnp.float32) + out).astype(o_ref.dtype)


def resnet_block(x, weights, biases, gammas, betas, *, tm=512,
                 mxu_dtype=jnp.bfloat16, lanes=None):
    """Fused ResNetBlock forward (inference semantics: Dropout == identity).

    x: (B, S, H). weights: (L, H, H) in (in, out) layout.
    biases/gammas/betas: (L, H).
    mxu_dtype: bf16 (default, all TPU generations) or f32 for bit-tight runs.
    lanes: packed lane width; None = auto (256 on v6e/v7x, 128 otherwise).
    """
    B, S, H = x.shape
    L = int(weights.shape[0])
    LANES = _pick_lanes() if lanes is None else int(lanes)
    assert LANES % H == 0, "hidden_dim must divide the packed lane width"
    # TODO(synk): for H not dividing LANES, pad H with a masked LayerNorm instead.
    G = LANES // H
    GH = G * H  # lane-dense output width (128 or 256)

    rows = B * S
    P = pl.cdiv(rows, G)                       # packed rows needed
    tm_eff = min(tm, _round_up(P, 8))          # avoid over-padding tiny inputs
    if P >= 16:
        # Keep the "parallel" row grid >= 2 steps so v7x's 2nd TC gets a shard.
        tm_eff = min(tm_eff, _round_up(pl.cdiv(P, 2), 8))
    P_pad = _round_up(P, tm_eff)
    rows_pad = P_pad * G

    x2 = x.reshape(rows, H)
    if rows_pad > rows:
        x2 = jnp.pad(x2, ((0, rows_pad - rows), (0, 0)))
    xp = x2.reshape(P_pad, GH)                 # G original rows per packed row

    eyeG = jnp.eye(G, dtype=jnp.float32)
    # Fold LN mean-centering into the weight / bias (exact two-pass form):
    #   hc = out @ (W - rowmean(W)) + (b - mean(b))
    w32 = weights.astype(jnp.float32)
    w_c = w32 - jnp.mean(w32, axis=-1, keepdims=True)
    b32 = biases.astype(jnp.float32)
    b_c = b32 - jnp.mean(b32, axis=-1, keepdims=True)
    # Block-diagonal weights: kron(I_G, W_c_l), stored in mxu_dtype.
    w_bd = jnp.einsum('ab,lij->laibj', eyeG, w_c).reshape(L, GH, GH)
    w_bd = w_bd.astype(mxu_dtype)
    # Block-diagonal averaging matrix (1/H exact in bf16 for power-of-2 H).
    avg = jnp.kron(eyeG, jnp.full((H, H), 1.0 / H, dtype=jnp.float32))
    avg = avg.astype(mxu_dtype)

    b_p = jnp.tile(b_c, (1, G)).reshape(L, 1, GH)
    g_p = jnp.tile(gammas.astype(jnp.float32), (1, G)).reshape(L, 1, GH)
    be_p = jnp.tile(betas.astype(jnp.float32), (1, G)).reshape(L, 1, GH)

    itm = jnp.dtype(mxu_dtype).itemsize
    cost = pl.CostEstimate(
        flops=int(2 * P_pad * GH * GH * 2 * L),     # fused linear + variance
        transcendentals=int(P_pad * GH * L),        # rsqrt
        bytes_accessed=int(2 * P_pad * GH * x.dtype.itemsize
                           + L * GH * GH * itm + GH * GH * itm
                           + 3 * L * GH * 4),
    )

    kernel = functools.partial(resnet_block_kernel, mxu_dtype=mxu_dtype)
    out = pl.pallas_call(
        kernel,
        out_shape=jax.ShapeDtypeStruct((P_pad, GH), x.dtype),
        grid_spec=pltpu.PrefetchScalarGridSpec(
            num_scalar_prefetch=0,
            grid=(P_pad // tm_eff,),
            in_specs=[
                pl.BlockSpec((tm_eff, GH), lambda i: (i, 0)),
                # Grid-invariant parameters (tiny at this H); fully resident.
                # TODO(synk): single-buffer these (pl.Buffered(1)) once the
                # large-H K-tiled variant makes their footprint non-trivial.
                pl.BlockSpec((L, GH, GH), lambda i: (0, 0, 0)),
                pl.BlockSpec((L, 1, GH), lambda i: (0, 0, 0)),
                pl.BlockSpec((L, 1, GH), lambda i: (0, 0, 0)),
                pl.BlockSpec((L, 1, GH), lambda i: (0, 0, 0)),
                pl.BlockSpec((GH, GH), lambda i: (0, 0)),
            ],
            out_specs=pl.BlockSpec((tm_eff, GH), lambda i: (i, 0)),
        ),
        compiler_params=pltpu.CompilerParams(
            dimension_semantics=("parallel",),
            vmem_limit_bytes=32 * 1024 * 1024),
        cost_estimate=cost,
    )(xp, w_bd, b_p, g_p, be_p, avg)

    return out.reshape(rows_pad, H)[:rows].reshape(B, S, H)


def reference(x, weights, biases, gammas, betas):
    """Pure-f32 reference of the PyTorch forward (Dropout = identity)."""
    out = x.astype(jnp.float32)
    x32 = out
    for l in range(weights.shape[0]):
        h = jnp.dot(out, weights[l].astype(jnp.float32),
                    preferred_element_type=jnp.float32) + biases[l]
        mu = jnp.mean(h, axis=-1, keepdims=True)
        var = jnp.mean((h - mu) ** 2, axis=-1, keepdims=True)
        hn = (h - mu) / jnp.sqrt(var + LN_EPS)
        hn = hn * gammas[l] + betas[l]
        out = jnp.maximum(hn, 0.0)
    return (x32 + out).astype(x.dtype)


if __name__ == "__main__":
    # hyperparas = {'hidden_dim': 32, 'block_layer_nums': 3, 'dropout_rate': 0.5}
    hidden_dim = 32
    block_layer_nums = 3
    L = block_layer_nums - 1  # number of (Linear, LayerNorm) pairs

    key = jax.random.PRNGKey(0)
    kx, kw, kb, kx2 = jax.random.split(key, 4)

    # Deterministic synthetic parameter init (PyTorch-like scale for Linear).
    weights = jax.random.uniform(
        kw, (L, hidden_dim, hidden_dim), dtype=jnp.float32,
        minval=-1.0, maxval=1.0) / jnp.sqrt(hidden_dim)
    biases = jax.random.uniform(
        kb, (L, hidden_dim), dtype=jnp.float32,
        minval=-1.0, maxval=1.0) / jnp.sqrt(hidden_dim)
    gammas = jnp.ones((L, hidden_dim), dtype=jnp.float32)   # LayerNorm init
    betas = jnp.zeros((L, hidden_dim), dtype=jnp.float32)

    # --- Case 1: small shapes (batch=2, seq=8, hidden=32), single/few tiles ---
    x = jax.random.normal(kx, (2, 8, hidden_dim), dtype=jnp.float32)
    ref = reference(x, weights, biases, gammas, betas)

    # Exact-ish f32 MXU path: tight check vs f32 reference.
    out_f32 = jax.block_until_ready(
        resnet_block(x, weights, biases, gammas, betas, mxu_dtype=jnp.float32))
    assert out_f32.shape == x.shape
    assert jnp.allclose(out_f32, ref, atol=1e-4, rtol=1e-4), \
        "f32 path mismatch vs reference"

    # Default bf16-operand MXU path: looser check vs f32 reference.
    out_bf16 = jax.block_until_ready(
        resnet_block(x, weights, biases, gammas, betas, mxu_dtype=jnp.bfloat16))
    assert jnp.allclose(out_bf16, ref, atol=5e-2, rtol=5e-2), \
        "bf16 path mismatch vs f32 reference"

    # --- Case 2: ragged rows (not divisible by G*tm), multi-step grid ---
    x2 = jax.random.normal(kx2, (3, 37, hidden_dim), dtype=jnp.float32)
    ref2 = reference(x2, weights, biases, gammas, betas)
    out2 = jax.block_until_ready(
        resnet_block(x2, weights, biases, gammas, betas,
                     tm=8, mxu_dtype=jnp.float32))
    assert out2.shape == x2.shape
    assert jnp.allclose(out2, ref2, atol=1e-4, rtol=1e-4), \
        "ragged/multi-tile path mismatch vs reference"

    print("KERNEL_OK")
</pallas_src>

<mosaic_0001>
module attributes {stable_mosaic.version = 11 : i64} {
  func.func @resnet_block_kernel(%arg0: i32, %arg1: memref<8x128xf32, #tpu.memory_space<vmem>>, %arg2: memref<2x128x128xf32, #tpu.memory_space<vmem>>, %arg3: memref<2x1x128xf32, #tpu.memory_space<vmem>>, %arg4: memref<2x1x128xf32, #tpu.memory_space<vmem>>, %arg5: memref<2x1x128xf32, #tpu.memory_space<vmem>>, %arg6: memref<128x128xf32, #tpu.memory_space<vmem>>, %arg7: memref<8x128xf32, #tpu.memory_space<vmem>>) attributes {dimension_semantics = [#tpu.dimension_semantics<parallel>], iteration_bounds = array<i64: 1>, scalar_prefetch = 0 : i64, scratch_operands = 0 : i64, tpu.core_type = #tpu.core_type<tc>, window_params = [{transform_indices = @transform_0, window_bounds = array<i64: 8, 128>}, {pipeline_mode = #tpu.pipeline_mode<synchronous>, transform_indices = @transform_1, window_bounds = array<i64: 2, 128, 128>}, {pipeline_mode = #tpu.pipeline_mode<synchronous>, transform_indices = @transform_2, window_bounds = array<i64: 2, 1, 128>}, {pipeline_mode = #tpu.pipeline_mode<synchronous>, transform_indices = @transform_3, window_bounds = array<i64: 2, 1, 128>}, {pipeline_mode = #tpu.pipeline_mode<synchronous>, transform_indices = @transform_4, window_bounds = array<i64: 2, 1, 128>}, {pipeline_mode = #tpu.pipeline_mode<synchronous>, transform_indices = @transform_5, window_bounds = array<i64: 128, 128>}, {transform_indices = @transform_6, window_bounds = array<i64: 8, 128>}]} {
    %c0 = arith.constant 0 : index
    %c0_0 = arith.constant 0 : index
    %0 = vector.load %arg1[%c0, %c0_0] : memref<8x128xf32, #tpu.memory_space<vmem>>, vector<8x128xf32>
    %c0_1 = arith.constant 0 : index
    %c0_2 = arith.constant 0 : index
    %1 = vector.load %arg6[%c0_1, %c0_2] : memref<128x128xf32, #tpu.memory_space<vmem>>, vector<128x128xf32>
    %c0_3 = arith.constant 0 : index
    %c0_4 = arith.constant 0 : index
    %c0_5 = arith.constant 0 : index
    %2 = vector.load %arg2[%c0_3, %c0_4, %c0_5] : memref<2x128x128xf32, #tpu.memory_space<vmem>>, vector<1x128x128xf32>
    %3 = vector.shape_cast %2 : vector<1x128x128xf32> to vector<128x128xf32>
    %cst = arith.constant dense<0.000000e+00> : vector<8x128xf32>
    %4 = tpu.matmul %0, %3, %cst {dimension_numbers = #tpu.dot_dimension_numbers<[1], [0], [0], [1], [0, 0, 1, 1], [], []>} : vector<8x128xf32>, vector<128x128xf32>, vector<8x128xf32> -> vector<8x128xf32>
    %c0_6 = arith.constant 0 : index
    %c0_7 = arith.constant 0 : index
    %c0_8 = arith.constant 0 : index
    %5 = vector.load %arg3[%c0_6, %c0_7, %c0_8] : memref<2x1x128xf32, #tpu.memory_space<vmem>>, vector<1x1x128xf32>
    %6 = vector.shape_cast %5 : vector<1x1x128xf32> to vector<1x128xf32>
    %7 = vector.broadcast %6 : vector<1x128xf32> to vector<8x128xf32>
    %8 = arith.addf %4, %7 : vector<8x128xf32>
    %9 = arith.mulf %8, %8 : vector<8x128xf32>
    %cst_9 = arith.constant dense<0.000000e+00> : vector<8x128xf32>
    %10 = tpu.matmul %9, %1, %cst_9 {dimension_numbers = #tpu.dot_dimension_numbers<[1], [0], [0], [1], [0, 0, 1, 1], [], []>} : vector<8x128xf32>, vector<128x128xf32>, vector<8x128xf32> -> vector<8x128xf32>
    %cst_10 = arith.constant 9.99999974E-6 : f32
    %11 = vector.broadcast %cst_10 : f32 to vector<8x128xf32>
    %12 = arith.addf %10, %11 : vector<8x128xf32>
    %13 = math.rsqrt %12 : vector<8x128xf32>
    %14 = arith.mulf %8, %13 : vector<8x128xf32>
    %c0_11 = arith.constant 0 : index
    %c0_12 = arith.constant 0 : index
    %c0_13 = arith.constant 0 : index
    %15 = vector.load %arg4[%c0_11, %c0_12, %c0_13] : memref<2x1x128xf32, #tpu.memory_space<vmem>>, vector<1x1x128xf32>
    %16 = vector.shape_cast %15 : vector<1x1x128xf32> to vector<1x128xf32>
    %17 = vector.broadcast %16 : vector<1x128xf32> to vector<8x128xf32>
    %18 = arith.mulf %14, %17 : vector<8x128xf32>
    %c0_14 = arith.constant 0 : index
    %c0_15 = arith.constant 0 : index
    %c0_16 = arith.constant 0 : index
    %19 = vector.load %arg5[%c0_14, %c0_15, %c0_16] : memref<2x1x128xf32, #tpu.memory_space<vmem>>, vector<1x1x128xf32>
    %20 = vector.shape_cast %19 : vector<1x1x128xf32> to vector<1x128xf32>
    %21 = vector.broadcast %20 : vector<1x128xf32> to vector<8x128xf32>
    %22 = arith.addf %18, %21 : vector<8x128xf32>
    %cst_17 = arith.constant 0.000000e+00 : f32
    %23 = vector.broadcast %cst_17 : f32 to vector<8x128xf32>
    %24 = arith.maximumf %22, %23 : vector<8x128xf32>
    %c1 = arith.constant 1 : index
    %c0_18 = arith.constant 0 : index
    %c0_19 = arith.constant 0 : index
    %25 = vector.load %arg2[%c1, %c0_18, %c0_19] : memref<2x128x128xf32, #tpu.memory_space<vmem>>, vector<1x128x128xf32>
    %26 = vector.shape_cast %25 : vector<1x128x128xf32> to vector<128x128xf32>
    %cst_20 = arith.constant dense<0.000000e+00> : vector<8x128xf32>
    %27 = tpu.matmul %24, %26, %cst_20 {dimension_numbers = #tpu.dot_dimension_numbers<[1], [0], [0], [1], [0, 0, 1, 1], [], []>} : vector<8x128xf32>, vector<128x128xf32>, vector<8x128xf32> -> vector<8x128xf32>
    %c1_21 = arith.constant 1 : index
    %c0_22 = arith.constant 0 : index
    %c0_23 = arith.constant 0 : index
    %28 = vector.load %arg3[%c1_21, %c0_22, %c0_23] : memref<2x1x128xf32, #tpu.memory_space<vmem>>, vector<1x1x128xf32>
    %29 = vector.shape_cast %28 : vector<1x1x128xf32> to vector<1x128xf32>
    %30 = vector.broadcast %29 : vector<1x128xf32> to vector<8x128xf32>
    %31 = arith.addf %27, %30 : vector<8x128xf32>
    %32 = arith.mulf %31, %31 : vector<8x128xf32>
    %cst_24 = arith.constant dense<0.000000e+00> : vector<8x128xf32>
    %33 = tpu.matmul %32, %1, %cst_24 {dimension_numbers = #tpu.dot_dimension_numbers<[1], [0], [0], [1], [0, 0, 1, 1], [], []>} : vector<8x128xf32>, vector<128x128xf32>, vector<8x128xf32> -> vector<8x128xf32>
    %cst_25 = arith.constant 9.99999974E-6 : f32
    %34 = vector.broadcast %cst_25 : f32 to vector<8x128xf32>
    %35 = arith.addf %33, %34 : vector<8x128xf32>
    %36 = math.rsqrt %35 : vector<8x128xf32>
    %37 = arith.mulf %31, %36 : vector<8x128xf32>
    %c1_26 = arith.constant 1 : index
    %c0_27 = arith.constant 0 : index
    %c0_28 = arith.constant 0 : index
    %38 = vector.load %arg4[%c1_26, %c0_27, %c0_28] : memref<2x1x128xf32, #tpu.memory_space<vmem>>, vector<1x1x128xf32>
    %39 = vector.shape_cast %38 : vector<1x1x128xf32> to vector<1x128xf32>
    %40 = vector.broadcast %39 : vector<1x128xf32> to vector<8x128xf32>
    %41 = arith.mulf %37, %40 : vector<8x128xf32>
    %c1_29 = arith.constant 1 : index
    %c0_30 = arith.constant 0 : index
    %c0_31 = arith.constant 0 : index
    %42 = vector.load %arg5[%c1_29, %c0_30, %c0_31] : memref<2x1x128xf32, #tpu.memory_space<vmem>>, vector<1x1x128xf32>
    %43 = vector.shape_cast %42 : vector<1x1x128xf32> to vector<1x128xf32>
    %44 = vector.broadcast %43 : vector<1x128xf32> to vector<8x128xf32>
    %45 = arith.addf %41, %44 : vector<8x128xf32>
    %cst_32 = arith.constant 0.000000e+00 : f32
    %46 = vector.broadcast %cst_32 : f32 to vector<8x128xf32>
    %47 = arith.maximumf %45, %46 : vector<8x128xf32>
    %c0_33 = arith.constant 0 : index
    %c0_34 = arith.constant 0 : index
    %48 = vector.load %arg1[%c0_33, %c0_34] : memref<8x128xf32, #tpu.memory_space<vmem>>, vector<8x128xf32>
    %49 = arith.addf %48, %47 : vector<8x128xf32>
    %c0_35 = arith.constant 0 : index
    %c0_36 = arith.constant 0 : index
    %50 = vector.load %arg7[%c0_35, %c0_36] : memref<8x128xf32, #tpu.memory_space<vmem>>, vector<8x128xf32>
    tpu.vector_store %arg7[%c0_35, %c0_36], %49 {strides = array<i32>} : memref<8x128xf32, #tpu.memory_space<vmem>>, vector<8x128xf32>,
    return
  }
  func.func @transform_0(%arg0: i32) -> (i32, i32) {
    %c0_i32 = arith.constant 0 : i32
    %c0_i32_0 = arith.constant 0 : i32
    return %arg0, %c0_i32 : i32, i32
  }
  func.func @transform_1(%arg0: i32) -> (i32, i32, i32) {
    %c0_i32 = arith.constant 0 : i32
    %c0_i32_0 = arith.constant 0 : i32
    %c0_i32_1 = arith.constant 0 : i32
    %c0_i32_2 = arith.constant 0 : i32
    return %c0_i32, %c0_i32_0, %c0_i32_1 : i32, i32, i32
  }
  func.func @transform_2(%arg0: i32) -> (i32, i32, i32) {
    %c0_i32 = arith.constant 0 : i32
    %c0_i32_0 = arith.constant 0 : i32
    %c0_i32_1 = arith.constant 0 : i32
    %c0_i32_2 = arith.constant 0 : i32
    return %c0_i32, %c0_i32_0, %c0_i32_1 : i32, i32, i32
  }
  func.func @transform_3(%arg0: i32) -> (i32, i32, i32) {
    %c0_i32 = arith.constant 0 : i32
    %c0_i32_0 = arith.constant 0 : i32
    %c0_i32_1 = arith.constant 0 : i32
    %c0_i32_2 = arith.constant 0 : i32
    return %c0_i32, %c0_i32_0, %c0_i32_1 : i32, i32, i32
  }
  func.func @transform_4(%arg0: i32) -> (i32, i32, i32) {
    %c0_i32 = arith.constant 0 : i32
    %c0_i32_0 = arith.constant 0 : i32
    %c0_i32_1 = arith.constant 0 : i32
    %c0_i32_2 = arith.constant 0 : i32
    return %c0_i32, %c0_i32_0, %c0_i32_1 : i32, i32, i32
  }
  func.func @transform_5(%arg0: i32) -> (i32, i32) {
    %c0_i32 = arith.constant 0 : i32
    %c0_i32_0 = arith.constant 0 : i32
    %c0_i32_1 = arith.constant 0 : i32
    return %c0_i32, %c0_i32_0 : i32, i32
  }
  func.func @transform_6(%arg0: i32) -> (i32, i32) {
    %c0_i32 = arith.constant 0 : i32
    %c0_i32_0 = arith.constant 0 : i32
    return %arg0, %c0_i32 : i32, i32
  }
}

</mosaic_0001>

<llo_original>
// kernel: tpu_custom_call.1
$region0: #{tpu_custom_call.1}
  #allocation0 [shape = 'u32[]', space=smem, size = 0x4, offset = 0x4, fixed_abs, tag = 'smem constant byte address 0x4 - core index']
  #allocation1 [shape = 'u32[72,128]{1,0:T(1,128)}', space=vmem, size = 0x9000, scoped, tag = 'internal scratch']
  %s0 = inlined_call_operand.hbm [shape: f32[8,128], index: 0, kind: input, shape index: {}]
  %s1 = inlined_call_operand.hbm [shape: f32[2,128,128], index: 1, kind: input, shape index: {}]
  %s2 = inlined_call_operand.hbm [shape: f32[2,1,128], index: 2, kind: input, shape index: {}]
  %s3 = inlined_call_operand.vmem [shape: f32[2,1,128], index: 3, kind: input, shape index: {}]
  %s4 = inlined_call_operand.hbm [shape: f32[2,1,128], index: 4, kind: input, shape index: {}]
  %s5 = inlined_call_operand.hbm [shape: f32[128,128], index: 5, kind: input, shape index: {}]
  %s6 = inlined_call_operand.hbm [shape: f32[8,128], index: 6, kind: output, shape index: {}]
  %s7 = sld [smem:[#allocation0]]
  $region54: #{tpu_custom_call.1} parent=0
    _
  %s9 = ssub.s32 1, %s7
  %s10 = scalar_select 0, %s9, %s7
  $region1: #{tpu_custom_call.1} parent=0
    #allocation2 [shape = 'u8[4096]{0}', space=vmem, size = 0x1000, scoped, tag = 'input window, operand 0, single buffered']
    #allocation3 [shape = 's32[1]{0}', space=sflag, size = 0x4, scoped, tag = 'scoped memory for tpu_custom_call.1']
    #allocation4 [shape = 's32[1]{0}', space=sflag, size = 0x4, scoped, tag = 'scoped memory for tpu_custom_call.1']
    #allocation5 [shape = 'u8[131072]{0}', space=vmem, size = 0x20000, scoped, tag = 'input window, operand 1, single buffered']
    #allocation6 [shape = 's32[1]{0}', space=sflag, size = 0x4, scoped, tag = 'scoped memory for tpu_custom_call.1']
    #allocation7 [shape = 'u8[1024]{0}', space=vmem, size = 0x400, scoped, tag = 'input window, operand 2, single buffered']
    #allocation8 [shape = 'u8[1024]{0}', space=vmem, size = 0x400, scoped, tag = 'input window, operand 4, single buffered']
    #allocation9 [shape = 's32[1]{0}', space=sflag, size = 0x4, scoped, tag = 'scoped memory for tpu_custom_call.1']
    #allocation10 [shape = 'u8[65536]{0}', space=vmem, size = 0x10000, scoped, tag = 'input window, operand 5, single buffered']
    #allocation11 [shape = 'u8[4096]{0}', space=vmem, size = 0x1000, scoped, tag = 'output window, operand 0, single buffered']
    %11 = vsyncpa [#allocation3], 0
    %12 = vsyncpa [#allocation6], 0
    %13 = vsyncpa [#allocation9], 0
    %14 = vsyncpa [#allocation4], 0
    // Predicated region
    $region2: #{tpu_custom_call.1} parent=1 // pred_check
      _
    $region3: #{tpu_custom_call.1} parent=1 // pred_check_branch
      %16 = sbr.rel (0) target = $region5
    $region4: #{tpu_custom_call.1} parent=1 // pred_region
      %18 = vsyncadd [#allocation3], 0
      %s20 = sshll.u32 %s0, 4
      %s21 = int_to_ptr.hbm [resolvable:$true] %s20
      %s22 = sshll.u32 [#allocation2], 4
      %s23 = int_to_ptr.vmem [resolvable:$true] %s22
      %25 = dma.hbm_to_vmem [thread:$0]  %s21, 128, %s23, [#allocation3]
    $region5: #{tpu_custom_call.1} parent=1 // pred_fallthru
      _
    // Predicated region
    $region6: #{tpu_custom_call.1} parent=1 // pred_check
      _
    $region7: #{tpu_custom_call.1} parent=1 // pred_check_branch
      %27 = sbr.rel (0) target = $region9
    $region8: #{tpu_custom_call.1} parent=1 // pred_region
      %29 = vsyncadd [#allocation6], 0
      %s30 = sshll.u32 %s1, 4
      %s31 = int_to_ptr.hbm [resolvable:$true] %s30
      %s32 = sshll.u32 [#allocation5], 4
      %s33 = int_to_ptr.vmem [resolvable:$true] %s32
      %38 = dma.hbm_to_vmem [thread:$0]  %s31, 4096, %s33, [#allocation6], 128, 128, 8
    $region9: #{tpu_custom_call.1} parent=1 // pred_fallthru
      _
    // Predicated region
    $region10: #{tpu_custom_call.1} parent=1 // pred_check
      _
    $region11: #{tpu_custom_call.1} parent=1 // pred_check_branch
      %40 = sbr.rel (0) target = $region13
    $region12: #{tpu_custom_call.1} parent=1 // pred_region
      %42 = vsyncadd [#allocation6], 0
      %s43 = sshll.u32 %s2, 4
      %s44 = int_to_ptr.hbm [resolvable:$true] %s43
      %s45 = sshll.u32 [#allocation7], 4
      %s46 = int_to_ptr.vmem [resolvable:$true] %s45
      %51 = dma.hbm_to_vmem [thread:$0]  %s44, 32, %s46, [#allocation6], 16, 16, 1
    $region13: #{tpu_custom_call.1} parent=1 // pred_fallthru
      _
    // Predicated region
    $region14: #{tpu_custom_call.1} parent=1 // pred_check
      _
    $region15: #{tpu_custom_call.1} parent=1 // pred_check_branch
      %53 = sbr.rel (0) target = $region17
    $region16: #{tpu_custom_call.1} parent=1 // pred_region
      _
    $region17: #{tpu_custom_call.1} parent=1 // pred_fallthru
      _
    // Predicated region
    $region18: #{tpu_custom_call.1} parent=1 // pred_check
      _
    $region19: #{tpu_custom_call.1} parent=1 // pred_check_branch
      %55 = sbr.rel (0) target = $region21
    $region20: #{tpu_custom_call.1} parent=1 // pred_region
      %57 = vsyncadd [#allocation9], 0
      %s58 = sshll.u32 %s4, 4
      %s59 = int_to_ptr.hbm [resolvable:$true] %s58
      %s60 = sshll.u32 [#allocation8], 4
      %s61 = int_to_ptr.vmem [resolvable:$true] %s60
      %66 = dma.hbm_to_vmem [thread:$0]  %s59, 32, %s61, [#allocation9], 16, 16, 1
    $region21: #{tpu_custom_call.1} parent=1 // pred_fallthru
      _
    // Predicated region
    $region22: #{tpu_custom_call.1} parent=1 // pred_check
      _
    $region23: #{tpu_custom_call.1} parent=1 // pred_check_branch
      %68 = sbr.rel (0) target = $region25
    $region24: #{tpu_custom_call.1} parent=1 // pred_region
      %70 = vsyncadd [#allocation9], 0
      %s71 = sshll.u32 %s5, 4
      %s72 = int_to_ptr.hbm [resolvable:$true] %s71
      %s73 = sshll.u32 [#allocation10], 4
      %s74 = int_to_ptr.vmem [resolvable:$true] %s73
      %79 = dma.hbm_to_vmem [thread:$0]  %s72, 2048, %s74, [#allocation9], 128, 128, 8
    $region25: #{tpu_custom_call.1} parent=1 // pred_fallthru
      _
    // Predicated region
    $region26: #{tpu_custom_call.1} parent=1 // pred_check
      _
    $region27: #{tpu_custom_call.1} parent=1 // pred_check_branch
      %81 = sbr.rel (0) target = $region29
    $region28: #{tpu_custom_call.1} parent=1 // pred_region
      %83 = dma.done [#allocation3], 128
    $region29: #{tpu_custom_call.1} parent=1 // pred_fallthru
      _
    // Predicated region
    $region30: #{tpu_custom_call.1} parent=1 // pred_check
      _
    $region31: #{tpu_custom_call.1} parent=1 // pred_check_branch
      %85 = sbr.rel (0) target = $region33
    $region32: #{tpu_custom_call.1} parent=1 // pred_region
      %87 = dma.done [#allocation6], 4096
    $region33: #{tpu_custom_call.1} parent=1 // pred_fallthru
      _
    // Predicated region
    $region34: #{tpu_custom_call.1} parent=1 // pred_check
      _
    $region35: #{tpu_custom_call.1} parent=1 // pred_check_branch
      %89 = sbr.rel (0) target = $region37
    $region36: #{tpu_custom_call.1} parent=1 // pred_region
      %91 = dma.done [#allocation6], 32
    $region37: #{tpu_custom_call.1} parent=1 // pred_fallthru
      _
    // Predicated region
    $region38: #{tpu_custom_call.1} parent=1 // pred_check
      _
    $region39: #{tpu_custom_call.1} parent=1 // pred_check_branch
      %93 = sbr.rel (0) target = $region41
    $region40: #{tpu_custom_call.1} parent=1 // pred_region
      %95 = dma.done [#allocation9], 32
    $region41: #{tpu_custom_call.1} parent=1 // pred_fallthru
      _
    // Predicated region
    $region42: #{tpu_custom_call.1} parent=1 // pred_check
      _
    $region43: #{tpu_custom_call.1} parent=1 // pred_check_branch
      %97 = sbr.rel (0) target = $region45
    $region44: #{tpu_custom_call.1} parent=1 // pred_region
      %99 = dma.done [#allocation9], 2048
    $region45: #{tpu_custom_call.1} parent=1 // pred_fallthru
      _
    %v100 = vld [vmem:[#allocation2] sm:$0xff]
    %v101 = vld [vmem:[#allocation10] sm:$0xff]
    %v102 = vld [vmem:[#allocation10 + $0x8] sm:$0xff]
    %v103 = vld [vmem:[#allocation10 + $0x10] sm:$0xff]
    %v104 = vld [vmem:[#allocation10 + $0x18] sm:$0xff]
    %v105 = vld [vmem:[#allocation10 + $0x20] sm:$0xff]
    %v106 = vld [vmem:[#allocation10 + $0x28] sm:$0xff]
    %v107 = vld [vmem:[#allocation10 + $0x30] sm:$0xff]
    %v108 = vld [vmem:[#allocation10 + $0x38] sm:$0xff]
    %v109 = vld [vmem:[#allocation10 + $0x40] sm:$0xff]
    %v110 = vld [vmem:[#allocation10 + $0x48] sm:$0xff]
    %v111 = vld [vmem:[#allocation10 + $0x50] sm:$0xff]
    %v112 = vld [vmem:[#allocation10 + $0x58] sm:$0xff]
    %v113 = vld [vmem:[#allocation10 + $0x60] sm:$0xff]
    %v114 = vld [vmem:[#allocation10 + $0x68] sm:$0xff]
    %v115 = vld [vmem:[#allocation10 + $0x70] sm:$0xff]
    %v116 = vld [vmem:[#allocation10 + $0x78] sm:$0xff]
    %v117 = vld [vmem:[#allocation5] sm:$0xff]
    %v118 = vld [vmem:[#allocation5 + $0x8] sm:$0xff]
    %v119 = vld [vmem:[#allocation5 + $0x10] sm:$0xff]
    %v120 = vld [vmem:[#allocation5 + $0x18] sm:$0xff]
    %v121 = vld [vmem:[#allocation5 + $0x20] sm:$0xff]
    %v122 = vld [vmem:[#allocation5 + $0x28] sm:$0xff]
    %v123 = vld [vmem:[#allocation5 + $0x30] sm:$0xff]
    %v124 = vld [vmem:[#allocation5 + $0x38] sm:$0xff]
    %v125 = vld [vmem:[#allocation5 + $0x40] sm:$0xff]
    %v126 = vld [vmem:[#allocation5 + $0x48] sm:$0xff]
    %v127 = vld [vmem:[#allocation5 + $0x50] sm:$0xff]
    %v128 = vld [vmem:[#allocation5 + $0x58] sm:$0xff]
    %v129 = vld [vmem:[#allocation5 + $0x60] sm:$0xff]
    %v130 = vld [vmem:[#allocation5 + $0x68] sm:$0xff]
    %v131 = vld [vmem:[#allocation5 + $0x70] sm:$0xff]
    %v132 = vld [vmem:[#allocation5 + $0x78] sm:$0xff]
    %v133 = vld [vmem:[#allocation7] sm:$0x1]
    %v135 = vperm.slane %v133, 0
    %137 = vmatpush.msra.mxu0 %v132
    %138 = vmatpush.msra.mxu0 %v131
    %139 = vmatpush.msra.mxu0 %v130
    %140 = vmatpush.msra.mxu0 %v129
    %141 = vmatpush.msra.mxu0 %v128
    %142 = vmatpush.msra.mxu0 %v127
    %143 = vmatpush.msra.mxu0 %v126
    %144 = vmatpush.msra.mxu0 %v125
    %145 = vmatpush.msra.mxu0 %v124
    %146 = vmatpush.msra.mxu0 %v123
    %147 = vmatpush.msra.mxu0 %v122
    %148 = vmatpush.msra.mxu0 %v121
    %149 = vmatpush.msra.mxu0 %v120
    %150 = vmatpush.msra.mxu0 %v119
    %151 = vmatpush.msra.mxu0 %v118
    %152 = vmatpush.msra.mxu0 %v117
    %153 = vmatmul.f32.gmra.mxu0 %v100
    %v154 = vpop.f32.mrf.mxu0
    %v155 = vadd.f32 %v135, %v154
    %156 = vdwg.mxu0
    %v157 = vmul.f32 %v155, %v155
    %158 = vmatpush.msra.mxu0 %v116
    %159 = vmatpush.msra.mxu0 %v115
    %160 = vmatpush.msra.mxu0 %v114
    %161 = vmatpush.msra.mxu0 %v113
    %162 = vmatpush.msra.mxu0 %v112
    %163 = vmatpush.msra.mxu0 %v111
    %164 = vmatpush.msra.mxu0 %v110
    %165 = vmatpush.msra.mxu0 %v109
    %166 = vmatpush.msra.mxu0 %v108
    %167 = vmatpush.msra.mxu0 %v107
    %168 = vmatpush.msra.mxu0 %v106
    %169 = vmatpush.msra.mxu0 %v105
    %170 = vmatpush.msra.mxu0 %v104
    %171 = vmatpush.msra.mxu0 %v103
    %172 = vmatpush.msra.mxu0 %v102
    %173 = vmatpush.msra.mxu0 %v101
    %174 = vmatmul.f32.gmra.mxu0 %v157
    %v175 = vpop.f32.mrf.mxu0
    %v176 = vadd.f32 1e-05, %v175
    %177 = vdwg.mxu0
    %v178 = vrsqrt.pop %v176
    %v179 = vmul.f32 %v178, %v176
    %v180 = vmul.f32 %v179, %v178
    %v181 = vmul.f32 0.5, %v180
    %v182 = vsub.f32 1.5, %v181
    %v183 = vmul.f32 %v178, %v182
    %vm184 = vweird.f32 %v176
    %vm185 = vweird.f32 %v178
    %vm186 = vmor %vm184, %vm185
    %v187 = vsel %vm186, %v178, %v183
    %v188 = vmul.f32 %v155, %v187
    %v189 = vld [vmem:[%s3] sm:$0x1]
    %v191 = vperm.slane %v189, 0
    %v193 = vmul.f32 %v188, %v191
    %v194 = vld [vmem:[#allocation8] sm:$0x1]
    %v196 = vperm.slane %v194, 0
    %v198 = vadd.f32 %v193, %v196
    %v199 = vmax.f32 %v198, 0.0
    %s200 = scalar_lea.vmem [#allocation5], 128
    %v201 = vld [vmem:[%s200] sm:$0xff]
    %v202 = vld [vmem:[%s200 + $0x8] sm:$0xff]
    %v203 = vld [vmem:[%s200 + $0x10] sm:$0xff]
    %v204 = vld [vmem:[%s200 + $0x18] sm:$0xff]
    %v205 = vld [vmem:[%s200 + $0x20] sm:$0xff]
    %v206 = vld [vmem:[%s200 + $0x28] sm:$0xff]
    %v207 = vld [vmem:[%s200 + $0x30] sm:$0xff]
    %v208 = vld [vmem:[%s200 + $0x38] sm:$0xff]
    %v209 = vld [vmem:[%s200 + $0x40] sm:$0xff]
    %v210 = vld [vmem:[%s200 + $0x48] sm:$0xff]
    %v211 = vld [vmem:[%s200 + $0x50] sm:$0xff]
    %v212 = vld [vmem:[%s200 + $0x58] sm:$0xff]
    %v213 = vld [vmem:[%s200 + $0x60] sm:$0xff]
    %v214 = vld [vmem:[%s200 + $0x68] sm:$0xff]
    %v215 = vld [vmem:[%s200 + $0x70] sm:$0xff]
    %v216 = vld [vmem:[%s200 + $0x78] sm:$0xff]
    %s217 = scalar_lea.vmem [#allocation7], 1
    %v218 = vld [vmem:[%s217] sm:$0x1]
    %v220 = vperm.slane %v218, 0
    %222 = vmatpush.msra.mxu0 %v216
    %223 = vmatpush.msra.mxu0 %v215
    %224 = vmatpush.msra.mxu0 %v214
    %225 = vmatpush.msra.mxu0 %v213
    %226 = vmatpush.msra.mxu0 %v212
    %227 = vmatpush.msra.mxu0 %v211
    %228 = vmatpush.msra.mxu0 %v210
    %229 = vmatpush.msra.mxu0 %v209
    %230 = vmatpush.msra.mxu0 %v208
    %231 = vmatpush.msra.mxu0 %v207
    %232 = vmatpush.msra.mxu0 %v206
    %233 = vmatpush.msra.mxu0 %v205
    %234 = vmatpush.msra.mxu0 %v204
    %235 = vmatpush.msra.mxu0 %v203
    %236 = vmatpush.msra.mxu0 %v202
    %237 = vmatpush.msra.mxu0 %v201
    %238 = vmatmul.f32.gmra.mxu0 %v199
    %v239 = vpop.f32.mrf.mxu0
    %v240 = vadd.f32 %v220, %v239
    %241 = vdwg.mxu0
    %v242 = vmul.f32 %v240, %v240
    %243 = vmatpush.msra.mxu0 %v116
    %244 = vmatpush.msra.mxu0 %v115
    %245 = vmatpush.msra.mxu0 %v114
    %246 = vmatpush.msra.mxu0 %v113
    %247 = vmatpush.msra.mxu0 %v112
    %248 = vmatpush.msra.mxu0 %v111
    %249 = vmatpush.msra.mxu0 %v110
    %250 = vmatpush.msra.mxu0 %v109
    %251 = vmatpush.msra.mxu0 %v108
    %252 = vmatpush.msra.mxu0 %v107
    %253 = vmatpush.msra.mxu0 %v106
    %254 = vmatpush.msra.mxu0 %v105
    %255 = vmatpush.msra.mxu0 %v104
    %256 = vmatpush.msra.mxu0 %v103
    %257 = vmatpush.msra.mxu0 %v102
    %258 = vmatpush.msra.mxu0 %v101
    %259 = vmatmul.f32.gmra.mxu0 %v242
    %v260 = vpop.f32.mrf.mxu0
    %v261 = vadd.f32 1e-05, %v260
    %262 = vdwg.mxu0
    %v263 = vrsqrt.pop %v261
    %v264 = vmul.f32 %v263, %v261
    %v265 = vmul.f32 %v264, %v263
    %v266 = vmul.f32 0.5, %v265
    %v267 = vsub.f32 1.5, %v266
    %v268 = vmul.f32 %v263, %v267
    %vm269 = vweird.f32 %v261
    %vm270 = vweird.f32 %v263
    %vm271 = vmor %vm269, %vm270
    %v272 = vsel %vm271, %v263, %v268
    %v273 = vmul.f32 %v240, %v272
    %s274 = scalar_lea.vmem %s3, 1
    %v275 = vld [vmem:[%s274] sm:$0x1]
    %v277 = vperm.slane %v275, 0
    %v279 = vmul.f32 %v273, %v277
    %s280 = scalar_lea.vmem [#allocation8], 1
    %v281 = vld [vmem:[%s280] sm:$0x1]
    %v283 = vperm.slane %v281, 0
    %v285 = vadd.f32 %v279, %v283
    %v286 = vmax.f32 %v285, 0.0
    %v287 = vadd.f32 %v100, %v286
    %288 = vst [vmem:[#allocation11] sm:$0xff] %v287
    // Predicated region
    $region46: #{tpu_custom_call.1} parent=1 // pred_check
      _
    $region47: #{tpu_custom_call.1} parent=1 // pred_check_branch
      %290 = sbr.rel (0) target = $region49
    $region48: #{tpu_custom_call.1} parent=1 // pred_region
      %292 = vsyncadd [#allocation4], 0
      %s294 = sshll.u32 [#allocation11], 4
      %s295 = int_to_ptr.vmem [resolvable:$true] %s294
      %s296 = sshll.u32 %s6, 4
      %s297 = int_to_ptr.hbm [resolvable:$true] %s296
      %299 = dma.vmem_to_hbm [thread:$0]  %s295, 128, %s297, [#allocation4]
    $region49: #{tpu_custom_call.1} parent=1 // pred_fallthru
      _
    // Predicated region
    $region50: #{tpu_custom_call.1} parent=1 // pred_check
      _
    $region51: #{tpu_custom_call.1} parent=1 // pred_check_branch
      %301 = sbr.rel (0) target = $region53
    $region52: #{tpu_custom_call.1} parent=1 // pred_region
      %303 = dma.done [#allocation4], 128
    $region53: #{tpu_custom_call.1} parent=1 // pred_fallthru
      _
    %304 = vsyncpa [#allocation3], 1
    %305 = vsyncpa [#allocation6], 1
    %306 = vsyncpa [#allocation9], 1
    %307 = vsyncpa [#allocation4], 1

</llo_original>
